<compile_context>
chip_gen: v6e
topology: v6e:2x2x1
jax: 0.10.0
libtpu: 0.0.40
codegen_flags: <defaults>
</compile_context>

<pallas_src>
import functools

import jax
import jax.numpy as jnp
from jax.experimental import pallas as pl
from jax.experimental.pallas import tpu as pltpu

EPS = 1e-5                            # nn.InstanceNorm2d default (affine=False)
_MXU_DTYPE = jnp.bfloat16
_VMEM_LIMIT = 32 * 1024 * 1024        # scoped VMEM cap (safe on v5e/v6e/v7x)
_IN_FUSED_BYTES = 2 * 1024 * 1024     # per-block f32 budget for single-pass IN


def _round_up(x, m):
    return (x + m - 1) // m * m


# ----------------------------------------------------------------------------
# Pallas kernels
# ----------------------------------------------------------------------------
def _matmul_bias_kernel(a_ref, b_ref, bias_ref, o_ref, *, activation):
    """o = activation(a @ b + bias); whole K/N resident in VMEM, grid over M."""
    acc = jnp.dot(a_ref[...], b_ref[...], preferred_element_type=jnp.float32)
    acc = acc + bias_ref[...]
    if activation == "tanh":
        acc = jnp.tanh(acc)
    o_ref[...] = acc.astype(o_ref.dtype)


def _in_fused_kernel(*refs, fold, relu, has_res):
    """Single-pass instance norm over a (1, S, Ct) block (+ReLU / +residual).

    With fold=2 the lane axis packs two spatial phases of C=64 channels; the
    per-phase statistics are recombined with one cheap XLU roll so loads and
    stores stay 128-lane dense."""
    if has_res:
        x_ref, res_ref, o_ref = refs
    else:
        x_ref, o_ref = refs
    x = x_ref[...]                               # (1, S_blk, CL)
    s1 = jnp.sum(x, axis=1)                      # (1, CL)
    s2 = jnp.sum(x * x, axis=1)
    if fold == 2:
        half = x.shape[2] // 2
        s1 = s1 + pltpu.roll(s1, shift=half, axis=1)
        s2 = s2 + pltpu.roll(s2, shift=half, axis=1)
    cnt = x.shape[1] * fold
    mean = s1 / cnt
    rstd = jax.lax.rsqrt(s2 / cnt - mean * mean + EPS)
    y = (x - mean[:, None, :]) * rstd[:, None, :]
    if has_res:
        y = y + res_ref[...]
    if relu:
        y = jnp.maximum(y, 0.0)
    o_ref[...] = y


def _in_stats_kernel(x_ref, sum_ref, ssq_ref):
    """Accumulate per-(n, channel-tile) sum / sum-of-squares over spatial tiles."""
    @pl.when(pl.program_id(2) == 0)
    def _():
        sum_ref[...] = jnp.zeros_like(sum_ref)
        ssq_ref[...] = jnp.zeros_like(ssq_ref)

    x = x_ref[...]
    sum_ref[...] += jnp.sum(x, axis=1, keepdims=True)
    ssq_ref[...] += jnp.sum(x * x, axis=1, keepdims=True)


def _in_apply_kernel(*refs, relu, has_res):
    """Elementwise normalize (+residual / +ReLU) with precomputed mean/rstd."""
    if has_res:
        x_ref, mean_ref, rstd_ref, res_ref, o_ref = refs
    else:
        x_ref, mean_ref, rstd_ref, o_ref = refs
    y = (x_ref[...] - mean_ref[...]) * rstd_ref[...]
    if has_res:
        y = y + res_ref[...]
    if relu:
        y = jnp.maximum(y, 0.0)
    o_ref[...] = y


# ----------------------------------------------------------------------------
# Pallas wrappers
# ----------------------------------------------------------------------------
def matmul_bias(a, b, bias, activation=None):
    """a: (M, K), b: (K, N), bias: (N,) -> activation(a @ b + bias), f32 (M, N).

    Weight-resident design: K and N are each covered by a single block (every
    layer's bf16 weight fits VMEM easily), so the grid runs over M only and
    both A and B are read from HBM exactly once.  Inputs are cast to bf16 for
    the MXU; accumulation / bias / tanh stay in f32.  K/N are padded to the
    128-lane grid (minimal padding) and M to the chosen tile."""
    M, K = a.shape
    K2, N = b.shape
    assert K == K2

    Kp = _round_up(K, 128)            # minimal, lane-aligned K padding
    Np = _round_up(N, 128)            # lane-dense stores even for Cout=3/64

    tm = min(1024, _round_up(M, 8))
    if _round_up(M, tm) // tm < 2 and M > 8:
        # expose >= 2 M blocks so dimension_semantics=("parallel",) can shard
        # across v7x's two TensorCores (harmless on single-TC v5e/v6e).
        tm = _round_up((M + 1) // 2, 8)
    # keep double-buffered A/B/out tiles comfortably inside the scoped limit
    while tm > 8 and 2 * (tm * Kp * 2 + Kp * Np * 2 + tm * Np * 4) > _VMEM_LIMIT - (2 << 20):
        tm = max(8, _round_up(tm // 2, 8))
    Mp = _round_up(M, tm)

    a_p = jnp.pad(a.astype(_MXU_DTYPE), ((0, Mp - M), (0, Kp - K)))
    b_p = jnp.pad(b.astype(_MXU_DTYPE), ((0, Kp - K), (0, Np - N)))
    bias_p = jnp.pad(bias.astype(jnp.float32), (0, Np - N)).reshape(1, Np)

    out = pl.pallas_call(
        functools.partial(_matmul_bias_kernel, activation=activation),
        out_shape=jax.ShapeDtypeStruct((Mp, Np), jnp.float32),
        grid=(Mp // tm,),
        in_specs=[
            pl.BlockSpec((tm, Kp), lambda i: (i, 0)),
            pl.BlockSpec((Kp, Np), lambda i: (0, 0)),   # VMEM-resident weight
            pl.BlockSpec((1, Np), lambda i: (0, 0)),
        ],
        out_specs=pl.BlockSpec((tm, Np), lambda i: (i, 0)),
        compiler_params=pltpu.CompilerParams(
            dimension_semantics=("parallel",),
            vmem_limit_bytes=_VMEM_LIMIT,
        ),
    )(a_p, b_p, bias_p)
    return out[:M, :N]


def _pick_spatial_tile(total, cap):
    """Largest divisor of `total` that is a multiple of 8 and <= cap."""
    best = 0
    d = 8
    while d <= min(total, cap):
        if total % d == 0:
            best = d
        d += 8
    return best if best else total


def _instance_norm(x, residual=None, *, relu, max_fused_bytes=_IN_FUSED_BYTES):
    """x (and optional residual): (N, H, W, C) f32 ->
       relu(IN(x))  if residual is None and relu
       residual + IN(x)  otherwise."""
    N, H, W, C = x.shape
    S = H * W
    has_res = residual is not None

    # Lane-density fold: view C=64 activations as 128-lane rows (two spatial
    # phases per row) so loads/stores are unmasked.
    fold = 2 if (C == 64 and S % 2 == 0) else 1
    Cf, Sf = C * fold, S // fold
    tc = 128 if Cf % 128 == 0 else Cf

    xv = x.reshape(N, Sf, Cf)
    resv = residual.reshape(N, Sf, Cf) if has_res else None

    if Sf * tc * 4 <= max_fused_bytes:
        # Single-pass: whole per-(instance, channel-tile) spatial extent in VMEM.
        spec = pl.BlockSpec((1, Sf, tc), lambda n, c: (n, 0, c))
        args = (xv, resv) if has_res else (xv,)
        out = pl.pallas_call(
            functools.partial(_in_fused_kernel, fold=fold, relu=relu,
                              has_res=has_res),
            out_shape=jax.ShapeDtypeStruct((N, Sf, Cf), jnp.float32),
            grid=(N, Cf // tc),
            in_specs=[spec] * len(args),
            out_specs=spec,
            compiler_params=pltpu.CompilerParams(
                dimension_semantics=("parallel", "parallel"),
                vmem_limit_bytes=_VMEM_LIMIT),
        )(*args)
        return out.reshape(N, H, W, C)

    # Two-pass, VMEM-bounded path (large images): spatially tiled statistics
    # accumulation (spatial grid axis "arbitrary"), then an elementwise apply.
    ts = _pick_spatial_tile(Sf, max(1, max_fused_bytes // (4 * tc)))
    grid = (N, Cf // tc, Sf // ts)
    x_spec = pl.BlockSpec((1, ts, tc), lambda n, c, s: (n, s, c))
    stat_spec = pl.BlockSpec((1, 1, tc), lambda n, c, s: (n, 0, c))

    sums, ssqs = pl.pallas_call(
        _in_stats_kernel,
        out_shape=(jax.ShapeDtypeStruct((N, 1, Cf), jnp.float32),
                   jax.ShapeDtypeStruct((N, 1, Cf), jnp.float32)),
        grid=grid,
        in_specs=[x_spec],
        out_specs=(stat_spec, stat_spec),
        compiler_params=pltpu.CompilerParams(
            dimension_semantics=("parallel", "parallel", "arbitrary"),
            vmem_limit_bytes=_VMEM_LIMIT),
    )(xv)

    if fold > 1:                       # recombine per-phase statistics
        sums = sums.reshape(N, 1, fold, C).sum(axis=2)
        ssqs = ssqs.reshape(N, 1, fold, C).sum(axis=2)
    cnt = float(S)
    mean = sums / cnt
    rstd = jax.lax.rsqrt(ssqs / cnt - mean * mean + EPS)
    if fold > 1:
        mean = jnp.tile(mean, (1, 1, fold))
        rstd = jnp.tile(rstd, (1, 1, fold))

    apply_in_specs = [x_spec, stat_spec, stat_spec] + ([x_spec] if has_res else [])
    apply_args = (xv, mean, rstd) + ((resv,) if has_res else ())
    out = pl.pallas_call(
        functools.partial(_in_apply_kernel, relu=relu, has_res=has_res),
        out_shape=jax.ShapeDtypeStruct((N, Sf, Cf), jnp.float32),
        grid=grid,
        in_specs=apply_in_specs,
        out_specs=x_spec,
        compiler_params=pltpu.CompilerParams(
            dimension_semantics=("parallel", "parallel", "parallel"),
            vmem_limit_bytes=_VMEM_LIMIT),
    )(*apply_args)
    return out.reshape(N, H, W, C)


def instance_norm_relu(x, **kw):
    """x: (N, H, W, C) -> relu(instance_norm(x))."""
    return _instance_norm(x, None, relu=True, **kw)


def instance_norm_add(x, residual, **kw):
    """x, residual: (N, H, W, C) -> residual + instance_norm(x)."""
    return _instance_norm(x, residual, relu=False, **kw)


# ----------------------------------------------------------------------------
# Conv glue (im2col / sub-pixel phases in plain JAX, matmuls in Pallas)
# ----------------------------------------------------------------------------
def _extract_patches(x, kh, kw, stride, padding):
    """x: (N,H,W,C) -> bf16 (N*Hout*Wout, kh*kw*C) patch matrix ((kh,kw,cin))."""
    N, H, W, C = x.shape
    xp = jnp.pad(x.astype(_MXU_DTYPE),
                 ((0, 0), (padding, padding), (padding, padding), (0, 0)))
    Hout = (H + 2 * padding - kh) // stride + 1
    Wout = (W + 2 * padding - kw) // stride + 1
    cols = []
    for i in range(kh):
        for j in range(kw):
            cols.append(
                xp[:, i:i + stride * Hout:stride, j:j + stride * Wout:stride, :])
    patches = jnp.concatenate(cols, axis=-1)     # (N, Hout, Wout, kh*kw*C)
    return patches.reshape(N * Hout * Wout, kh * kw * C), Hout, Wout


def conv2d(x, w, b, stride=1, padding=0, activation=None):
    """x: (N,H,W,Cin) NHWC; w: (Cout,Cin,KH,KW) (PyTorch layout); b: (Cout,)."""
    Cout, Cin, KH, KW = w.shape
    N = x.shape[0]
    patches, Hout, Wout = _extract_patches(x, KH, KW, stride, padding)
    w2 = jnp.transpose(w, (2, 3, 1, 0)).reshape(KH * KW * Cin, Cout)
    out = matmul_bias(patches, w2, b, activation=activation)
    return out.reshape(N, Hout, Wout, Cout)


def conv_transpose2d(x, w, b, stride=2, padding=1, output_padding=1):
    """x: (N,H,W,Cin); w: (Cin,Cout,KH,KW) (PyTorch ConvTranspose2d layout).

    Sub-pixel (stride-phase) decomposition: instead of zero-dilating the input
    (75% zeros -> 4x wasted MXU MACs / patch traffic), run one small conv per
    output phase on the un-dilated input and interleave the four results.
    Specialised to the generator's k=3, s=2, p=1, op=1 layers."""
    Cin, Cout, KH, KW = w.shape
    assert (KH, KW, stride, padding, output_padding) == (3, 3, 2, 1, 1), \
        "sub-pixel decomposition specialised to k3 s2 p1 op1"
    N, H, W_, _ = x.shape

    xb = x.astype(_MXU_DTYPE)
    xp = jnp.pad(xb, ((0, 0), (0, 1), (0, 1), (0, 0)))   # bottom/right halo
    x00 = xb                         # x[a,   b  ]
    x01 = xp[:, :H, 1:W_ + 1, :]     # x[a,   b+1]
    x10 = xp[:, 1:H + 1, :W_, :]     # x[a+1, b  ]
    x11 = xp[:, 1:H + 1, 1:W_ + 1, :]

    def wmat(taps):
        # taps: list of (ky, kx) into the ConvTranspose kernel, matching the
        # channel-concat order of the patch matrix; each w[:,:,ky,kx] is
        # already (Cin, Cout).
        return jnp.concatenate([w[:, :, ky, kx] for ky, kx in taps], axis=0)

    def phase(slices, taps):
        a = jnp.concatenate(slices, axis=-1).reshape(
            N * H * W_, len(slices) * Cin)
        o = matmul_bias(a, wmat(taps), b)
        return o.reshape(N, H, W_, Cout)

    # out[2a,   2b  ] = x[a,b]  · w[1,1]
    # out[2a,   2b+1] = x[a,b]  · w[1,2] + x[a,b+1] · w[1,0]
    # out[2a+1, 2b  ] = x[a,b]  · w[2,1] + x[a+1,b] · w[0,1]
    # out[2a+1, 2b+1] = x[a,b]·w[2,2] + x[a,b+1]·w[2,0]
    #                 + x[a+1,b]·w[0,2] + x[a+1,b+1]·w[0,0]
    ee = phase([x00], [(1, 1)])
    eo = phase([x00, x01], [(1, 2), (1, 0)])
    oe = phase([x00, x10], [(2, 1), (0, 1)])
    oo = phase([x00, x01, x10, x11], [(2, 2), (2, 0), (0, 2), (0, 0)])

    row_e = jnp.stack([ee, eo], axis=3).reshape(N, H, 2 * W_, Cout)
    row_o = jnp.stack([oe, oo], axis=3).reshape(N, H, 2 * W_, Cout)
    return jnp.stack([row_e, row_o], axis=2).reshape(N, 2 * H, 2 * W_, Cout)


# ----------------------------------------------------------------------------
# Generator: parameters + forward
# ----------------------------------------------------------------------------
def init_params(key, num_residual_blocks=9):
    def conv_init(k, cout, cin, ksz):
        k1, k2 = jax.random.split(k)
        w = jax.random.normal(k1, (cout, cin, ksz, ksz), jnp.float32) * 0.05
        b = jax.random.normal(k2, (cout,), jnp.float32) * 0.05
        return w, b

    def convT_init(k, cin, cout, ksz):
        k1, k2 = jax.random.split(k)
        w = jax.random.normal(k1, (cin, cout, ksz, ksz), jnp.float32) * 0.05
        b = jax.random.normal(k2, (cout,), jnp.float32) * 0.05
        return w, b

    keys = iter(jax.random.split(key, 6 + 2 * num_residual_blocks))
    params = {
        "initial": conv_init(next(keys), 64, 3, 7),
        "down1": conv_init(next(keys), 128, 64, 3),
        "down2": conv_init(next(keys), 256, 128, 3),
        "res": [
            (*conv_init(next(keys), 256, 256, 3), *conv_init(next(keys), 256, 256, 3))
            for _ in range(num_residual_blocks)
        ],
        "up1": convT_init(next(keys), 256, 128, 3),
        "up2": convT_init(next(keys), 128, 64, 3),
        "out": conv_init(next(keys), 3, 64, 7),
    }
    return params


def generator_forward(params, x_nchw):
    # NCHW (PyTorch) -> NHWC (kernel layout)
    x = jnp.transpose(x_nchw, (0, 2, 3, 1)).astype(jnp.float32)

    # initial: Conv(3->64, k7, p3) + IN + ReLU
    x = conv2d(x, *params["initial"], stride=1, padding=3)
    x = instance_norm_relu(x)

    # downsampling: two Conv(k3, s2, p1) + IN + ReLU
    x = conv2d(x, *params["down1"], stride=2, padding=1)
    x = instance_norm_relu(x)
    x = conv2d(x, *params["down2"], stride=2, padding=1)
    x = instance_norm_relu(x)

    # residual blocks: x + IN(Conv(ReLU(IN(Conv(x)))))
    for (w1, b1, w2, b2) in params["res"]:
        h = conv2d(x, w1, b1, stride=1, padding=1)
        h = instance_norm_relu(h)
        h = conv2d(h, w2, b2, stride=1, padding=1)
        x = instance_norm_add(h, x)

    # upsampling: two ConvTranspose(k3, s2, p1, op1) + IN + ReLU
    x = conv_transpose2d(x, *params["up1"], stride=2, padding=1, output_padding=1)
    x = instance_norm_relu(x)
    x = conv_transpose2d(x, *params["up2"], stride=2, padding=1, output_padding=1)
    x = instance_norm_relu(x)

    # output: Conv(64->3, k7, p3) + Tanh (tanh fused into the Pallas matmul;
    # Cout=3 is lane-padded to 128 inside matmul_bias then sliced back)
    x = conv2d(x, *params["out"], stride=1, padding=3, activation="tanh")

    # NHWC -> NCHW to match the PyTorch output convention
    return jnp.transpose(x, (0, 3, 1, 2))


# ----------------------------------------------------------------------------
# Self-checks + demo
# ----------------------------------------------------------------------------
def _ref_instance_norm(x):
    m = jnp.mean(x, axis=(1, 2), keepdims=True)
    v = jnp.mean(jnp.square(x - m), axis=(1, 2), keepdims=True)
    return (x - m) * jax.lax.rsqrt(v + EPS)


if __name__ == "__main__":
    key = jax.random.PRNGKey(0)
    k_param, k_input, k_a, k_b = jax.random.split(key, 4)

    # -- matmul (weight-resident, fused bias) vs f32 ref on bf16-rounded inputs
    a = jax.random.normal(k_a, (70, 150), jnp.float32)
    bmat = jax.random.normal(k_b, (150, 100), jnp.float32) * 0.1
    bias = jnp.arange(100, dtype=jnp.float32) * 0.01
    got = matmul_bias(a, bmat, bias)
    ref = jnp.dot(a.astype(jnp.bfloat16).astype(jnp.float32),
                  bmat.astype(jnp.bfloat16).astype(jnp.float32)) + bias
    assert bool(jnp.allclose(got, ref, atol=5e-2, rtol=5e-2)), "matmul mismatch"

    # -- instance norm: fused (lane-folded C=64) and two-pass tiled paths
    xt = jax.random.normal(k_a, (2, 8, 8, 64), jnp.float32)
    ref_in = jnp.maximum(_ref_instance_norm(xt), 0.0)
    assert bool(jnp.allclose(instance_norm_relu(xt), ref_in,
                             atol=1e-3, rtol=1e-3)), "fused IN mismatch"
    assert bool(jnp.allclose(instance_norm_relu(xt, max_fused_bytes=4096),
                             ref_in, atol=1e-3, rtol=1e-3)), "tiled IN mismatch"
    xr = jax.random.normal(k_b, (2, 4, 4, 256), jnp.float32)
    res = jax.random.normal(k_a, (2, 4, 4, 256), jnp.float32)
    ref_add = res + _ref_instance_norm(xr)
    assert bool(jnp.allclose(instance_norm_add(xr, res), ref_add,
                             atol=1e-3, rtol=1e-3)), "fused IN+res mismatch"
    assert bool(jnp.allclose(instance_norm_add(xr, res, max_fused_bytes=4096),
                             ref_add, atol=1e-3, rtol=1e-3)), "tiled IN+res mismatch"

    # -- sub-pixel ConvTranspose2d vs lax.conv_general_dilated reference
    k1, k2, k3 = jax.random.split(k_param, 3)
    xct = jax.random.normal(k1, (1, 5, 5, 8), jnp.float32)
    wct = jax.random.normal(k2, (8, 4, 3, 3), jnp.float32) * 0.1
    bct = jax.random.normal(k3, (4,), jnp.float32) * 0.1
    got_ct = conv_transpose2d(xct, wct, bct)
    w_eq = jnp.transpose(wct[:, :, ::-1, ::-1], (2, 3, 0, 1))   # HWIO
    ref_ct = jax.lax.conv_general_dilated(
        xct, w_eq, window_strides=(1, 1), padding=((1, 2), (1, 2)),
        lhs_dilation=(2, 2),
        dimension_numbers=("NHWC", "HWIO", "NHWC")) + bct
    assert got_ct.shape == ref_ct.shape == (1, 10, 10, 4)
    assert bool(jnp.allclose(got_ct, ref_ct, atol=5e-2, rtol=5e-2)), \
        "conv_transpose mismatch"

    # -- full generator forward (small input consistent with the module)
    params = init_params(k_param, num_residual_blocks=9)
    x = jax.random.normal(k_input, (2, 3, 16, 16), jnp.float32)
    y = jax.block_until_ready(jax.jit(generator_forward)(params, x))

    assert y.shape == (2, 3, 16, 16), y.shape
    assert bool(jnp.all(jnp.isfinite(y)))
    assert bool(jnp.all(jnp.abs(y) <= 1.0))  # tanh range

    print("KERNEL_OK")
</pallas_src>

<mosaic_0001>
module attributes {stable_mosaic.version = 11 : i64} {
  func.func @_matmul_bias_kernel(%arg0: i32, %arg1: memref<40x256xbf16, #tpu.memory_space<vmem>>, %arg2: memref<256x128xbf16, #tpu.memory_space<vmem>>, %arg3: memref<1x128xf32, #tpu.memory_space<vmem>>, %arg4: memref<40x128xf32, #tpu.memory_space<vmem>>) attributes {dimension_semantics = [#tpu.dimension_semantics<parallel>], iteration_bounds = array<i64: 2>, scalar_prefetch = 0 : i64, scratch_operands = 0 : i64, tpu.core_type = #tpu.core_type<tc>, window_params = [{transform_indices = @transform_0, window_bounds = array<i64: 40, 256>}, {pipeline_mode = #tpu.pipeline_mode<synchronous>, transform_indices = @transform_1, window_bounds = array<i64: 256, 128>}, {pipeline_mode = #tpu.pipeline_mode<synchronous>, transform_indices = @transform_2, window_bounds = array<i64: 1, 128>}, {transform_indices = @transform_3, window_bounds = array<i64: 40, 128>}]} {
    %c0 = arith.constant 0 : index
    %c0_0 = arith.constant 0 : index
    %0 = vector.load %arg1[%c0, %c0_0] : memref<40x256xbf16, #tpu.memory_space<vmem>>, vector<40x256xbf16>
    %c0_1 = arith.constant 0 : index
    %c0_2 = arith.constant 0 : index
    %1 = vector.load %arg2[%c0_1, %c0_2] : memref<256x128xbf16, #tpu.memory_space<vmem>>, vector<256x128xbf16>
    %cst = arith.constant dense<0.000000e+00> : vector<40x128xf32>
    %2 = tpu.matmul %0, %1, %cst {dimension_numbers = #tpu.dot_dimension_numbers<[1], [0], [0], [1], [0, 0, 1, 1], [], []>} : vector<40x256xbf16>, vector<256x128xbf16>, vector<40x128xf32> -> vector<40x128xf32>
    %c0_3 = arith.constant 0 : index
    %c0_4 = arith.constant 0 : index
    %3 = vector.load %arg3[%c0_3, %c0_4] : memref<1x128xf32, #tpu.memory_space<vmem>>, vector<1x128xf32>
    %4 = vector.broadcast %3 : vector<1x128xf32> to vector<40x128xf32>
    %5 = arith.addf %2, %4 : vector<40x128xf32>
    %c0_5 = arith.constant 0 : index
    %c0_6 = arith.constant 0 : index
    %6 = vector.load %arg4[%c0_5, %c0_6] : memref<40x128xf32, #tpu.memory_space<vmem>>, vector<40x128xf32>
    tpu.vector_store %arg4[%c0_5, %c0_6], %5 {strides = array<i32>} : memref<40x128xf32, #tpu.memory_space<vmem>>, vector<40x128xf32>,
    return
  }
  func.func @transform_0(%arg0: i32) -> (i32, i32) {
    %c0_i32 = arith.constant 0 : i32
    %c0_i32_0 = arith.constant 0 : i32
    return %arg0, %c0_i32 : i32, i32
  }
  func.func @transform_1(%arg0: i32) -> (i32, i32) {
    %c0_i32 = arith.constant 0 : i32
    %c0_i32_0 = arith.constant 0 : i32
    %c0_i32_1 = arith.constant 0 : i32
    return %c0_i32, %c0_i32_0 : i32, i32
  }
  func.func @transform_2(%arg0: i32) -> (i32, i32) {
    %c0_i32 = arith.constant 0 : i32
    %c0_i32_0 = arith.constant 0 : i32
    %c0_i32_1 = arith.constant 0 : i32
    return %c0_i32, %c0_i32_0 : i32, i32
  }
  func.func @transform_3(%arg0: i32) -> (i32, i32) {
    %c0_i32 = arith.constant 0 : i32
    %c0_i32_0 = arith.constant 0 : i32
    return %arg0, %c0_i32 : i32, i32
  }
}

</mosaic_0001>

<llo_original>
// kernel: tpu_custom_call.1
$region0: #{tpu_custom_call.1}
  #allocation0 [shape = 'u32[]', space=smem, size = 0x4, offset = 0x4, fixed_abs, tag = 'smem constant byte address 0x4 - core index']
  #allocation1 [shape = 'u32[144,128]{1,0:T(1,128)}', space=vmem, size = 0x12000, scoped, tag = 'internal scratch']
  %s0 = inlined_call_operand.hbm [shape: bf16[80,256], index: 0, kind: input, shape index: {}]
  %s1 = inlined_call_operand.hbm [shape: bf16[256,128], index: 1, kind: input, shape index: {}]
  %s2 = inlined_call_operand.vmem [shape: f32[1,128], index: 2, kind: input, shape index: {}]
  %s3 = inlined_call_operand.hbm [shape: f32[80,128], index: 3, kind: output, shape index: {}]
  %s4 = sld [smem:[#allocation0]]
  $region53: #{tpu_custom_call.1} parent=0
    _
  %s6 = ssub.s32 1, %s4
  %s7 = scalar_select 0, %s6, %s4
  $region1: #{tpu_custom_call.1} parent=0
    #allocation2 [shape = 'u8[40960]{0}', space=vmem, size = 0xa000, scoped, tag = 'input window, operand 0']
    #allocation3 [shape = 's32[2]{0}', space=sflag, size = 0x8, scoped, tag = 'scoped memory for tpu_custom_call.1']
    #allocation4 [shape = 's32[2]{0}', space=sflag, size = 0x8, scoped, tag = 'scoped memory for tpu_custom_call.1']
    #allocation5 [shape = 'u8[65536]{0}', space=vmem, size = 0x10000, scoped, tag = 'input window, operand 1, single buffered']
    #allocation6 [shape = 's32[1]{0}', space=sflag, size = 0x4, scoped, tag = 'scoped memory for tpu_custom_call.1']
    #allocation7 [shape = 'u8[40960]{0}', space=vmem, size = 0xa000, scoped, tag = 'output window, operand 0']
    %8 = vsyncpa [#allocation3], 0
    %s9 = scalar_lea.sflag [#allocation3], 1
    %10 = vsyncpa %s9, 0
    %11 = vsyncpa [#allocation6], 0
    %12 = vsyncpa [#allocation4], 0
    %s13 = scalar_lea.sflag [#allocation4], 1
    %14 = vsyncpa %s13, 0
    loop: start=0, step=1, limit=4
    $region2: #{tpu_custom_call.1} parent=1 // loop_pre_header
      _
    $region3: #{tpu_custom_call.1} parent=1 // loop_header
      %s16 = sphi 0, %s20
      %p17 = scmp.ge.s32.totalorder %s16, 4
      %s26 = sphi 0, %s28
      %s29 = sphi 0, %s26
      %s30 = sphi 0, %s29
      %s46 = sphi 0, %s30
      %s50 = sphi 0, %s50
      %s52 = sphi 0, %s50
      %s53 = sphi 0, %s52
      %s67 = sphi 0, %s53
      %s71 = sphi 0, %s71
      %s73 = sphi 0, %s71
      %s74 = sphi 0, %s73
      %s88 = sphi 0, %s74
      %s94 = sphi 0, %s96
      %s97 = sphi 0, %s94
      %s98 = sphi 0, %s97
      %s114 = sphi 0, %s98
    $region4: #{tpu_custom_call.1} parent=1 // loop_header_branch
      %19 = sbr.rel (%p17) target = $region8
    $region5: #{tpu_custom_call.1} parent=1 // loop_body
      %s21 = ssub.s32 %s16, 1
      %s22 = ssub.s32 %s16, 2
      %s23 = sadd.s32 %s16, 1
      %s24 = ssub.s32 %s16, %s23
      %p25 = scmp.eq.s32.totalorder %s24, 0
      %s27 = sadd.s32 %s26, 1
      %s28 = scalar_select %p25, %s26, %s27
      %p31 = pneg %p25
      %p32 = scmp.eq.s32.totalorder %s16, 1
      %p33 = por %p31, %p32
      %p34 = scmp.ne.s32.totalorder %s26, %s29
      %p35 = scmp.eq.s32.totalorder %s16, 0
      %p36 = por %p34, %p35
      %p37 = scmp.ne.s32.totalorder %s26, %s29
      %p38 = scmp.eq.s32.totalorder %s21, 1
      %p39 = por %p37, %p38
      %p40 = scmp.ne.s32.totalorder %s29, %s30
      %p41 = scmp.eq.s32.totalorder %s21, 0
      %p42 = por %p40, %p41
      %p43 = scmp.ne.s32.totalorder %s29, %s30
      %p44 = scmp.eq.s32.totalorder %s22, 1
      %p45 = por %p43, %p44
      %p47 = scmp.ne.s32.totalorder %s30, %s46
      %p48 = scmp.eq.s32.totalorder %s22, 0
      %p49 = por %p47, %p48
      %s51 = sadd.s32 %s50, 1
      %p54 = scmp.eq.s32.totalorder %s16, 1
      %p55 = scmp.ne.s32.totalorder %s50, %s52
      %p56 = scmp.eq.s32.totalorder %s16, 0
      %p57 = por %p55, %p56
      %p58 = scmp.ne.s32.totalorder %s50, %s52
      %p59 = scmp.eq.s32.totalorder %s21, 1
      %p60 = por %p58, %p59
      %p61 = scmp.ne.s32.totalorder %s52, %s53
      %p62 = scmp.eq.s32.totalorder %s21, 0
      %p63 = por %p61, %p62
      %p64 = scmp.ne.s32.totalorder %s52, %s53
      %p65 = scmp.eq.s32.totalorder %s22, 1
      %p66 = por %p64, %p65
      %p68 = scmp.ne.s32.totalorder %s53, %s67
      %p69 = scmp.eq.s32.totalorder %s22, 0
      %p70 = por %p68, %p69
      %s72 = sadd.s32 %s71, 1
      %p75 = scmp.eq.s32.totalorder %s16, 1
      %p76 = scmp.ne.s32.totalorder %s71, %s73
      %p77 = scmp.eq.s32.totalorder %s16, 0
      %p78 = por %p76, %p77
      %p79 = scmp.ne.s32.totalorder %s71, %s73
      %p80 = scmp.eq.s32.totalorder %s21, 1
      %p81 = por %p79, %p80
      %p82 = scmp.ne.s32.totalorder %s73, %s74
      %p83 = scmp.eq.s32.totalorder %s21, 0
      %p84 = por %p82, %p83
      %p85 = scmp.ne.s32.totalorder %s73, %s74
      %p86 = scmp.eq.s32.totalorder %s22, 1
      %p87 = por %p85, %p86
      %p89 = scmp.ne.s32.totalorder %s74, %s88
      %p90 = scmp.eq.s32.totalorder %s22, 0
      %p91 = por %p89, %p90
      %s92 = ssub.s32 %s16, %s23
      %p93 = scmp.eq.s32.totalorder %s92, 0
      %s95 = sadd.s32 %s94, 1
      %s96 = scalar_select %p93, %s94, %s95
      %p99 = pneg %p93
      %p100 = scmp.eq.s32.totalorder %s16, 1
      %p101 = por %p99, %p100
      %p102 = scmp.ne.s32.totalorder %s94, %s97
      %p103 = scmp.eq.s32.totalorder %s16, 0
      %p104 = por %p102, %p103
      %p105 = scmp.ne.s32.totalorder %s94, %s97
      %p106 = scmp.eq.s32.totalorder %s21, 1
      %p107 = por %p105, %p106
      %p108 = scmp.ne.s32.totalorder %s97, %s98
      %p109 = scmp.eq.s32.totalorder %s21, 0
      %p110 = por %p108, %p109
      %p111 = scmp.ne.s32.totalorder %s97, %s98
      %p112 = scmp.eq.s32.totalorder %s22, 1
      %p113 = por %p111, %p112
      %p115 = scmp.ne.s32.totalorder %s98, %s114
      %p116 = scmp.eq.s32.totalorder %s22, 0
      %p117 = por %p115, %p116
      %p118 = scmp.le.s32.totalorder 1, %s16
      %p119 = scmp.lt.s32.totalorder %s16, 3
      %p120 = pnand %p118, %p119
      %p121 = pneg %p120
      // Predicated region
      $region9: #{tpu_custom_call.1} parent=5 // pred_check
        _
      $region10: #{tpu_custom_call.1} parent=5 // pred_check_branch
        %123 = sbr.rel (%p120) target = $region12
      $region11: #{tpu_custom_call.1} parent=5 // pred_region
        %s124 = ssub.s32 %s16, 1
        // Predicated region
        $region13: #{tpu_custom_call.1} parent=11 // pred_check
          %p125 = pneg %p63
        $region14: #{tpu_custom_call.1} parent=11 // pred_check_branch
          %127 = sbr.rel (%p125) target = $region16
        $region15: #{tpu_custom_call.1} parent=11 // pred_region
          %s129 = ssub.s32 2048, 2048
          %130 = vsyncadd [#allocation6], %s129
          %s131 = sshll.u32 [#allocation5], 4
          %s132 = int_to_ptr.vmem [resolvable:$true] %s131
          %137 = dma.hbm_to_vmem [thread:$0]  %s1, 2048, %s132, [#allocation6], 64, 64, 4
        $region16: #{tpu_custom_call.1} parent=11 // pred_fallthru
          _
        // Predicated region
        $region17: #{tpu_custom_call.1} parent=11 // pred_check
          %p138 = pneg %p84
        $region18: #{tpu_custom_call.1} parent=11 // pred_check_branch
          %140 = sbr.rel (%p138) target = $region20
        $region19: #{tpu_custom_call.1} parent=11 // pred_region
          _
        $region20: #{tpu_custom_call.1} parent=11 // pred_fallthru
          _
      $region12: #{tpu_custom_call.1} parent=5 // pred_fallthru
        _
      %p141 = scmp.lt.s32.totalorder %s16, 2
      // Predicated region
      $region21: #{tpu_custom_call.1} parent=5 // pred_check
        %p142 = pneg %p141
      $region22: #{tpu_custom_call.1} parent=5 // pred_check_branch
        %144 = sbr.rel (%p142) target = $region24
      $region23: #{tpu_custom_call.1} parent=5 // pred_region
        // Predicated region
        $region25: #{tpu_custom_call.1} parent=23 // pred_check
          %p145 = pneg %p36
        $region26: #{tpu_custom_call.1} parent=23 // pred_check_branch
          %147 = sbr.rel (%p145) target = $region28
        $region27: #{tpu_custom_call.1} parent=23 // pred_region
          %s148 = sand.u32 %s26, 1
          %s149 = scalar_lea.sflag [#allocation3], %s148
          %s150 = sand.u32 %s26, 1
          %s151 = smul.addr %s150, 40
          %s152 = scalar_lea.vmem [#allocation2], %s151
          %s153 = smul.u32 5, %s16
          %s155 = ssub.s32 640, 640
          %156 = vsyncadd %s149, %s155
          %s157 = smul.addr %s153, 2
          %s158 = smul.addr %s157, 64
          %s159 = scalar_lea.hbm %s0, %s158
          %s160 = sshll.u32 %s152, 4
          %s161 = int_to_ptr.vmem [resolvable:$true] %s160
          %166 = dma.hbm_to_vmem [thread:$0]  %s159, 640, %s161, %s149, 128, 128, 8
        $region28: #{tpu_custom_call.1} parent=23 // pred_fallthru
          _
      $region24: #{tpu_custom_call.1} parent=5 // pred_fallthru
        _
      %p167 = scmp.le.s32.totalorder 1, %s16
      %p168 = scmp.lt.s32.totalorder %s16, 3
      %p169 = pnand %p167, %p168
      %p170 = pneg %p169
      // Predicated region
      $region29: #{tpu_custom_call.1} parent=5 // pred_check
        _
      $region30: #{tpu_custom_call.1} parent=5 // pred_check_branch
        %172 = sbr.rel (%p169) target = $region32
      $region31: #{tpu_custom_call.1} parent=5 // pred_region
        %s173 = ssub.s32 %s16, 1
        %s174 = sand.u32 %s29, 1
        %s175 = scalar_lea.sflag [#allocation3], %s174
        %s176 = sand.u32 %s29, 1
        %s177 = smul.addr %s176, 40
        %s178 = scalar_lea.vmem [#allocation2], %s177
        // Predicated region
        $region33: #{tpu_custom_call.1} parent=31 // pred_check
          %p179 = pneg %p42
        $region34: #{tpu_custom_call.1} parent=31 // pred_check_branch
          %181 = sbr.rel (%p179) target = $region36
        $region35: #{tpu_custom_call.1} parent=31 // pred_region
          %182 = dma.done %s175, 640
        $region36: #{tpu_custom_call.1} parent=31 // pred_fallthru
          _
        // Predicated region
        $region37: #{tpu_custom_call.1} parent=31 // pred_check
          %p183 = pneg %p63
        $region38: #{tpu_custom_call.1} parent=31 // pred_check_branch
          %185 = sbr.rel (%p183) target = $region40
        $region39: #{tpu_custom_call.1} parent=31 // pred_region
          %186 = dma.done [#allocation6], 2048
        $region40: #{tpu_custom_call.1} parent=31 // pred_fallthru
          _
        %s187 = sand.u32 %s29, 1
        %s188 = scalar_lea.sflag [#allocation3], %s187
        %s189 = sand.u32 %s29, 1
        %s190 = smul.addr %s189, 40
        %s191 = scalar_lea.vmem [#allocation2], %s190
        %p192 = pneg %p42
        %p193 = pneg %p39
        %p194 = pneg %p63
        %p195 = pneg %p60
        %p196 = pneg %p84
        %p197 = pneg %p81
        %p198 = pneg %p110
        %p199 = pneg %p107
        %s200 = sand.u32 %s97, 1
        %s201 = scalar_lea.sflag [#allocation4], %s200
        %s202 = sand.u32 %s97, 1
        %s203 = smul.addr %s202, 40
        %s204 = scalar_lea.vmem [#allocation7], %s203
        %s205 = smul.u32 5, %s21
        %s206 = smul.u32 5, %s21
        %v208 = vld [vmem:[%s178] sm:$0xff]
        %v209 = vld [vmem:[%s178 + $0x8] sm:$0xff]
        %v210 = vld [vmem:[%s178 + $0x10] sm:$0xff]
        %v211 = vld [vmem:[%s178 + $0x18] sm:$0xff]
        %v212 = vld [vmem:[%s178 + $0x20] sm:$0xff]
        %v213 = vld [vmem:[#allocation5] sm:$0xf]
        %v214 = vld [vmem:[#allocation5 + $0x4] sm:$0xf]
        %v215 = vld [vmem:[#allocation5 + $0x8] sm:$0xf]
        %v216 = vld [vmem:[#allocation5 + $0xc] sm:$0xf]
        %v217 = vld [vmem:[#allocation5 + $0x10] sm:$0xf]
        %v218 = vld [vmem:[#allocation5 + $0x14] sm:$0xf]
        %v219 = vld [vmem:[#allocation5 + $0x18] sm:$0xf]
        %v220 = vld [vmem:[#allocation5 + $0x1c] sm:$0xf]
        %v221 = vld [vmem:[#allocation5 + $0x20] sm:$0xf]
        %v222 = vld [vmem:[#allocation5 + $0x24] sm:$0xf]
        %v223 = vld [vmem:[#allocation5 + $0x28] sm:$0xf]
        %v224 = vld [vmem:[#allocation5 + $0x2c] sm:$0xf]
        %v225 = vld [vmem:[#allocation5 + $0x30] sm:$0xf]
        %v226 = vld [vmem:[#allocation5 + $0x34] sm:$0xf]
        %v227 = vld [vmem:[#allocation5 + $0x38] sm:$0xf]
        %v228 = vld [vmem:[#allocation5 + $0x3c] sm:$0xf]
        %v229 = vld [vmem:[#allocation5 + $0x40] sm:$0xf]
        %v230 = vld [vmem:[#allocation5 + $0x44] sm:$0xf]
        %v231 = vld [vmem:[#allocation5 + $0x48] sm:$0xf]
        %v232 = vld [vmem:[#allocation5 + $0x4c] sm:$0xf]
        %v233 = vld [vmem:[#allocation5 + $0x50] sm:$0xf]
        %v234 = vld [vmem:[#allocation5 + $0x54] sm:$0xf]
        %v235 = vld [vmem:[#allocation5 + $0x58] sm:$0xf]
        %v236 = vld [vmem:[#allocation5 + $0x5c] sm:$0xf]
        %v237 = vld [vmem:[#allocation5 + $0x60] sm:$0xf]
        %v238 = vld [vmem:[#allocation5 + $0x64] sm:$0xf]
        %v239 = vld [vmem:[#allocation5 + $0x68] sm:$0xf]
        %v240 = vld [vmem:[#allocation5 + $0x6c] sm:$0xf]
        %v241 = vld [vmem:[#allocation5 + $0x70] sm:$0xf]
        %v242 = vld [vmem:[#allocation5 + $0x74] sm:$0xf]
        %v243 = vld [vmem:[#allocation5 + $0x78] sm:$0xf]
        %v244 = vld [vmem:[#allocation5 + $0x7c] sm:$0xf]
        %v245 = vld [vmem:[%s2] sm:$0x1]
        %v247 = vlaneseq
        %v248 = vshrl.u32 %v247, 7
        %v249 = vsub.s32 0, %v248
        %v250 = vrot.slane %v245, %v249
        %v257 = vunpack.c.l.b16 %v208
        %v258 = vunpack.c.h.b16 %v208
        %v259 = vunpack.c.l.b16 %v209
        %v260 = vunpack.c.h.b16 %v209
        %v261 = vunpack.c.l.b16 %v210
        %v262 = vunpack.c.h.b16 %v210
        %v263 = vunpack.c.l.b16 %v211
        %v264 = vunpack.c.h.b16 %v211
        %v265 = vunpack.c.l.b16 %v212
        %v266 = vunpack.c.h.b16 %v212
        %v267 = vpack.c.b16 %v259, %v257
        %v268 = vpack.c.b16 %v260, %v258
        %v269 = vpack.c.b16 %v263, %v261
        %v270 = vpack.c.b16 %v264, %v262
        %v271 = vpack.c.b16 %v265, %v265
        %v272 = vpack.c.b16 %v266, %v266
        %v311 = vunpack.c.l.b16 %v213
        %v312 = vunpack.c.l.b16 %v214
        %v313 = vunpack.c.l.b16 %v215
        %v314 = vunpack.c.l.b16 %v216
        %v315 = vunpack.c.l.b16 %v217
        %v316 = vunpack.c.l.b16 %v218
        %v317 = vunpack.c.l.b16 %v219
        %v318 = vunpack.c.l.b16 %v220
        %v319 = vunpack.c.l.b16 %v221
        %v320 = vunpack.c.l.b16 %v222
        %v321 = vunpack.c.l.b16 %v223
        %v322 = vunpack.c.l.b16 %v224
        %v323 = vunpack.c.l.b16 %v225
        %v324 = vunpack.c.l.b16 %v226
        %v325 = vunpack.c.l.b16 %v227
        %v326 = vunpack.c.l.b16 %v228
        %v327 = vunpack.c.l.b16 %v229
        %v328 = vunpack.c.l.b16 %v230
        %v329 = vunpack.c.l.b16 %v231
        %v330 = vunpack.c.l.b16 %v232
        %v331 = vunpack.c.l.b16 %v233
        %v332 = vunpack.c.l.b16 %v234
        %v333 = vunpack.c.l.b16 %v235
        %v334 = vunpack.c.l.b16 %v236
        %v335 = vunpack.c.l.b16 %v237
        %v336 = vunpack.c.l.b16 %v238
        %v337 = vunpack.c.l.b16 %v239
        %v338 = vunpack.c.l.b16 %v240
        %v339 = vunpack.c.l.b16 %v241
        %v340 = vunpack.c.l.b16 %v242
        %v341 = vunpack.c.l.b16 %v243
        %v342 = vunpack.c.l.b16 %v244
        %v343 = vpack.c.b16 %v312, %v311
        %v344 = vpack.c.b16 %v314, %v313
        %v345 = vpack.c.b16 %v316, %v315
        %v346 = vpack.c.b16 %v318, %v317
        %v347 = vpack.c.b16 %v320, %v319
        %v348 = vpack.c.b16 %v322, %v321
        %v349 = vpack.c.b16 %v324, %v323
        %v350 = vpack.c.b16 %v326, %v325
        %v351 = vpack.c.b16 %v328, %v327
        %v352 = vpack.c.b16 %v330, %v329
        %v353 = vpack.c.b16 %v332, %v331
        %v354 = vpack.c.b16 %v334, %v333
        %v355 = vpack.c.b16 %v336, %v335
        %v356 = vpack.c.b16 %v338, %v337
        %v357 = vpack.c.b16 %v340, %v339
        %v358 = vpack.c.b16 %v342, %v341
        %375 = vmatprep.subr.bf16.mxu0 0
        %376 = vmatpush1.bf16.msra.mxu0 %v350
        %377 = vmatprep.subr.bf16.mxu0 0
        %378 = vmatpush1.bf16.msra.mxu0 %v349
        %379 = vmatprep.subr.bf16.mxu0 0
        %380 = vmatpush1.bf16.msra.mxu0 %v348
        %381 = vmatprep.subr.bf16.mxu0 0
        %382 = vmatpush1.bf16.msra.mxu0 %v347
        %383 = vmatprep.subr.bf16.mxu0 0
        %384 = vmatpush1.bf16.msra.mxu0 %v346
        %385 = vmatprep.subr.bf16.mxu0 0
        %386 = vmatpush1.bf16.msra.mxu0 %v345
        %387 = vmatprep.subr.bf16.mxu0 0
        %388 = vmatpush1.bf16.msra.mxu0 %v344
        %389 = vmatprep.subr.bf16.mxu0 0
        %390 = vmatpush1.bf16.msra.mxu0 %v343
        %391 = vmatprep.subr.bf16.mxu0 0
        %392 = vmatpush2.bf16.msra.mxu0 %v358
        %393 = vmatprep.subr.bf16.mxu0 0
        %394 = vmatpush2.bf16.msra.mxu0 %v357
        %395 = vmatprep.subr.bf16.mxu0 0
        %396 = vmatpush2.bf16.msra.mxu0 %v356
        %397 = vmatprep.subr.bf16.mxu0 0
        %398 = vmatpush2.bf16.msra.mxu0 %v355
        %399 = vmatprep.subr.bf16.mxu0 0
        %400 = vmatpush2.bf16.msra.mxu0 %v354
        %401 = vmatprep.subr.bf16.mxu0 0
        %402 = vmatpush2.bf16.msra.mxu0 %v353
        %403 = vmatprep.subr.bf16.mxu0 0
        %404 = vmatpush2.bf16.msra.mxu0 %v352
        %405 = vmatprep.subr.bf16.mxu0 0
        %406 = vmatpush2.bf16.msra.mxu0 %v351
        %407 = vmatprep.mubr.bf16.mxu0 %v268
        %408 = vmatmul.mubr.bf16.gmra.mxu0 %v267
        %v409 = vpop.f32.mrf.mxu0
        %v410 = vadd.f32 %v250, %v409
        %v411 = vpop.f32.mrf.mxu0
        %v412 = vpop.f32.mrf.mxu0
        %v413 = vadd.f32 %v250, %v412
        %v414 = vpop.f32.mrf.mxu0
        %415 = vmatprep.mubr.bf16.mxu0 %v270
        %416 = vmatmul.mubr.bf16.gmra.mxu0 %v269
        %v417 = vpop.f32.mrf.mxu0
        %v418 = vadd.f32 %v250, %v417
        %v419 = vpop.f32.mrf.mxu0
        %v420 = vpop.f32.mrf.mxu0
        %v421 = vadd.f32 %v250, %v420
        %v422 = vpop.f32.mrf.mxu0
        %423 = vmatprep.mubr.bf16.mxu0 %v272
        %424 = vmatmul.mubr.bf16.gmra.mxu0 %v271
        %v425 = vpop.f32.mrf.mxu0
        %v426 = vadd.f32 %v250, %v425
        %v427 = vpop.f32.mrf.mxu0
        %v428 = vpop.f32.mrf.mxu0
        %v429 = vpop.f32.mrf.mxu0
        %430 = vdwg.mxu0
        %431 = vst [vmem:[%s204] sm:$0xff] %v410
        %432 = vst [vmem:[%s204 + $0x8] sm:$0xff] %v413
        %433 = vst [vmem:[%s204 + $0x10] sm:$0xff] %v418
        %434 = vst [vmem:[%s204 + $0x18] sm:$0xff] %v421
        %435 = vst [vmem:[%s204 + $0x20] sm:$0xff] %v426
        %s436 = sand.u32 %s97, 1
        %s437 = scalar_lea.sflag [#allocation4], %s436
        %s438 = sand.u32 %s97, 1
        %s439 = smul.addr %s438, 40
        %s440 = scalar_lea.vmem [#allocation7], %s439
        // Predicated region
        $region41: #{tpu_custom_call.1} parent=31 // pred_check
          %p441 = pneg %p107
        $region42: #{tpu_custom_call.1} parent=31 // pred_check_branch
          %443 = sbr.rel (%p441) target = $region44
        $region43: #{tpu_custom_call.1} parent=31 // pred_region
          %s444 = smul.u32 5, %s21
          %s446 = ssub.s32 640, 640
          %447 = vsyncadd %s437, %s446
          %s448 = smul.addr %s444, 128
          %s449 = scalar_lea.hbm %s3, %s448
          %s450 = sshll.u32 %s440, 4
          %s451 = int_to_ptr.vmem [resolvable:$true] %s450
          %456 = dma.vmem_to_hbm [thread:$0]  %s451, 640, %s449, %s437, 128, 128, 8
        $region44: #{tpu_custom_call.1} parent=31 // pred_fallthru
          _
      $region32: #{tpu_custom_call.1} parent=5 // pred_fallthru
        _
      %p457 = scmp.le.s32.totalorder 2, %s16
      // Predicated region
      $region45: #{tpu_custom_call.1} parent=5 // pred_check
        %p458 = pneg %p457
      $region46: #{tpu_custom_call.1} parent=5 // pred_check_branch
        %460 = sbr.rel (%p458) target = $region48
      $region47: #{tpu_custom_call.1} parent=5 // pred_region
        %s461 = ssub.s32 %s16, 2
        // Predicated region
        $region49: #{tpu_custom_call.1} parent=47 // pred_check
          %p462 = pneg %p113
        $region50: #{tpu_custom_call.1} parent=47 // pred_check_branch
          %464 = sbr.rel (%p462) target = $region52
        $region51: #{tpu_custom_call.1} parent=47 // pred_region
          %s465 = sand.u32 %s98, 1
          %s466 = scalar_lea.sflag [#allocation4], %s465
          %s467 = sand.u32 %s98, 1
          %s468 = smul.addr %s467, 40
          %s469 = scalar_lea.vmem [#allocation7], %s468
          %470 = dma.done %s466, 640
        $region52: #{tpu_custom_call.1} parent=47 // pred_fallthru
          _
      $region48: #{tpu_custom_call.1} parent=5 // pred_fallthru
        _
    $region6: #{tpu_custom_call.1} parent=1 // loop_footer
      %s20 = sadd.s32 1, %s16
    $region7: #{tpu_custom_call.1} parent=1 // loop_footer_branch
      %15 = sbr.rel target = $region3
    $region8: #{tpu_custom_call.1} parent=1 // loop_exit
      _
    %471 = vsyncpa [#allocation3], 1
    %s472 = scalar_lea.sflag [#allocation3], 1
    %473 = vsyncpa %s472, 1
    %474 = vsyncpa [#allocation6], 1
    %475 = vsyncpa [#allocation4], 1
    %s476 = scalar_lea.sflag [#allocation4], 1
    %477 = vsyncpa %s476, 1

</llo_original>
